<compile_context>
chip_gen: v5e
topology: v5e:2x2
jax: 0.10.0
libtpu: 0.0.40
codegen_flags: <defaults>
</compile_context>

<pallas_src>
import math

import jax
import jax.numpy as jnp
import numpy as np
from jax import lax
from jax.experimental import pallas as pl
from jax.experimental.pallas import tpu as pltpu


def _cpa_kernel(xf_ref, w1_ref, w2c_ref, cbias_ref, w3t_ref, w4t_ref, b4_ref,
                ca_ref, pa_ref):
    """Whole forward pass for all batch items (everything fits in VMEM).

    xf_ref  : [B*C, HW]  input rows, HW on lanes (lane-dense)
    w1_ref  : [FS, HW]   fc1.weight (PyTorch [out, in] layout)
    w2c_ref : [FS, 1]    fc2.weight as a column
    cbias   : [1, C]     learnable channel bias
    w3t_ref : [HW, FS]   fc3.weight^T
    w4t_ref : [FS, HW]   fc4.weight^T
    b4_ref  : [1, HW]    fc4.bias
    ca_ref  : [B, C]     channel attention weights (softmax over C)
    pa_ref  : [B, HW]    pixel attention weights (softmax over HW)
    """
    B, C = ca_ref.shape
    BC, HW = xf_ref.shape

    xf = xf_ref[...]                                                  # [B*C, HW]

    # ---------------- channel branch (all batches at once) ----------------
    # fc1 for every (batch, channel) row as ONE NT matmul (contract on HW):
    #   h1t[f, k] = sum_hw W1[f, hw] * x[k, hw]            -> [FS, B*C]
    h1t = lax.dot_general(
        w1_ref[...], xf,
        dimension_numbers=(((1,), (1,)), ((), ())),
        preferred_element_type=jnp.float32)
    h1t = jnp.maximum(h1t, 0.0)                                       # ReLU

    # fc2 has a single output unit: VPU multiply + sublane reduce instead of a
    # 1-row MXU matmul.  Result is one lane row holding all B*C logits.
    logits = jnp.sum(h1t * w2c_ref[...], axis=0, keepdims=True)       # [1, B*C]

    # Per-batch softmax over C.  B is tiny & static -> unrolled lane-segment
    # math on the VPU; stores are 2 tiny row writes (negligible at this size).
    for i in range(B):
        seg = logits[:, i * C:(i + 1) * C] + cbias_ref[...]           # [1, C]
        seg = seg - jnp.max(seg, axis=-1, keepdims=True)
        e = jnp.exp(seg)
        inv = pl.reciprocal(jnp.sum(e, axis=-1, keepdims=True), approx=True)
        ca_ref[pl.ds(i, 1), :] = e * inv

    # ---------------- pixel branch (all batches at once) ----------------
    # Per-batch channel mean via a tiny averaging matmul (keeps everything 2D,
    # no in-kernel reshape):  avg[b, k] = 1/C  iff  k in [b*C, (b+1)*C).
    rows = lax.broadcasted_iota(jnp.int32, (B, BC), 0)
    cols = lax.broadcasted_iota(jnp.int32, (B, BC), 1)
    in_group = jnp.logical_and(cols >= rows * C, cols < rows * C + C)
    avg = jnp.where(in_group, jnp.float32(1.0 / C), jnp.float32(0.0))  # [B, B*C]
    pf = jnp.dot(avg, xf, preferred_element_type=jnp.float32)          # [B, HW]

    h3 = jnp.maximum(
        jnp.dot(pf, w3t_ref[...], preferred_element_type=jnp.float32),
        0.0)                                                           # [B, FS]
    p4 = jnp.dot(h3, w4t_ref[...],
                 preferred_element_type=jnp.float32) + b4_ref[...]     # [B, HW]
    p4 = p4 - jnp.max(p4, axis=-1, keepdims=True)
    e2 = jnp.exp(p4)
    inv2 = pl.reciprocal(jnp.sum(e2, axis=-1, keepdims=True), approx=True)
    pa_ref[...] = e2 * inv2                                            # one lane-dense store


def _full_spec(shape):
    zeros = (0,) * len(shape)
    return pl.BlockSpec(shape, lambda i, _z=zeros: _z)


def channel_pixel_attention_forward(x, params):
    """x: [B, C, H, W] float32 (NCHW, like the PyTorch module)."""
    b, c, h, w = x.shape
    hw = h * w
    fs = params["W1"].shape[0]

    x_flat = x.reshape(b * c, hw).astype(jnp.float32)        # [B*C, HW], no transpose
    W1 = params["W1"].astype(jnp.float32)                    # [FS, HW]
    w2_col = params["W2"].reshape(fs, 1).astype(jnp.float32) # [FS, 1]
    cbias = params["cbias"].reshape(1, c).astype(jnp.float32)
    W3T = params["W3"].T.astype(jnp.float32)                 # [HW, FS]
    W4T = params["W4"].T.astype(jnp.float32)                 # [FS, HW]
    b4 = params["b4"].reshape(1, hw).astype(jnp.float32)     # [1, HW]

    inputs = (x_flat, W1, w2_col, cbias, W3T, W4T, b4)

    flops = 2 * (b * c * hw * fs      # fc1 over all B*C rows
                 + b * c * fs         # fc2 multiply-reduce
                 + b * b * c * hw     # channel-mean matmul
                 + b * hw * fs        # fc3
                 + b * fs * hw)       # fc4
    transcendentals = b * c + b * hw + 2 * b          # exps + approx reciprocals
    bytes_accessed = 4 * (sum(int(np.prod(a.shape)) for a in inputs)
                          + b * c + b * hw)

    ca, pa = pl.pallas_call(
        _cpa_kernel,
        grid=(1,),
        in_specs=[_full_spec(a.shape) for a in inputs],
        out_specs=[_full_spec((b, c)), _full_spec((b, hw))],
        out_shape=(
            jax.ShapeDtypeStruct((b, c), jnp.float32),
            jax.ShapeDtypeStruct((b, hw), jnp.float32),
        ),
        compiler_params=pltpu.CompilerParams(
            dimension_semantics=("arbitrary",)),
        cost_estimate=pl.CostEstimate(
            flops=flops,
            transcendentals=transcendentals,
            bytes_accessed=bytes_accessed),
    )(*inputs)

    return ca, pa.reshape(b, 1, hw)


def reference(x, params):
    """Pure-JAX reference matching the PyTorch forward."""
    b, c, h, w = x.shape
    hw = h * w
    xr = x.reshape(b, c, hw)
    # channel branch
    cf = jnp.maximum(jnp.einsum("bch,fh->bcf", xr, params["W1"]), 0.0)
    cf = jnp.einsum("bcf,of->bco", cf, params["W2"])[..., 0]          # [B, C]
    ca = jax.nn.softmax(cf + params["cbias"], axis=1)                 # softmax over C
    # pixel branch
    pf = jnp.mean(xr, axis=1)                                         # [B, HW]
    pf = jnp.maximum(pf @ params["W3"].T, 0.0)
    pf = pf @ params["W4"].T + params["b4"]
    pa = jax.nn.softmax(pf, axis=1).reshape(b, 1, hw)                 # softmax over HW
    return ca, pa


def make_params(in_channels, feature_size, key):
    """Deterministic synthetic init mirroring the nn.Module's parameter shapes."""
    hw = feature_size * feature_size
    fs = feature_size
    k1, k2, k3, k4, k5 = jax.random.split(key, 5)
    return {
        "W1": jax.random.normal(k1, (fs, hw), jnp.float32) / math.sqrt(hw),   # fc1.weight
        "W2": jax.random.normal(k2, (1, fs), jnp.float32) / math.sqrt(fs),    # fc2.weight
        "cbias": jnp.zeros((in_channels,), jnp.float32),                      # self.bias
        "W3": jax.random.normal(k3, (fs, hw), jnp.float32) / math.sqrt(hw),   # fc3.weight
        "W4": jax.random.normal(k4, (hw, fs), jnp.float32) / math.sqrt(fs),   # fc4.weight
        "b4": jax.random.normal(k5, (hw,), jnp.float32) * 0.01,               # fc4.bias
    }


if __name__ == "__main__":
    B, C, FEAT = 2, 4, 16          # in_channels=4, feature_size=16 -> H=W=16, HW=256
    key = jax.random.PRNGKey(0)
    kx, kp = jax.random.split(key)

    x = jax.random.normal(kx, (B, C, FEAT, FEAT), jnp.float32)
    params = make_params(C, FEAT, kp)

    ca, pa = channel_pixel_attention_forward(x, params)
    ca, pa = jax.block_until_ready(ca), jax.block_until_ready(pa)

    ca_ref, pa_ref = reference(x, params)
    np.testing.assert_allclose(np.asarray(ca), np.asarray(ca_ref), rtol=2e-3, atol=2e-3)
    np.testing.assert_allclose(np.asarray(pa), np.asarray(pa_ref), rtol=2e-3, atol=2e-3)
    assert ca.shape == (B, C) and pa.shape == (B, 1, FEAT * FEAT)

    print("KERNEL_OK")
</pallas_src>

<mosaic_0001>
module attributes {stable_mosaic.version = 11 : i64} {
  func.func @_cpa_kernel(%arg0: i32, %arg1: memref<8x256xf32, #tpu.memory_space<vmem>>, %arg2: memref<16x256xf32, #tpu.memory_space<vmem>>, %arg3: memref<16x1xf32, #tpu.memory_space<vmem>>, %arg4: memref<1x4xf32, #tpu.memory_space<vmem>>, %arg5: memref<256x16xf32, #tpu.memory_space<vmem>>, %arg6: memref<16x256xf32, #tpu.memory_space<vmem>>, %arg7: memref<1x256xf32, #tpu.memory_space<vmem>>, %arg8: memref<2x4xf32, #tpu.memory_space<vmem>>, %arg9: memref<2x256xf32, #tpu.memory_space<vmem>>) attributes {dimension_semantics = [#tpu.dimension_semantics<arbitrary>], iteration_bounds = array<i64: 1>, scalar_prefetch = 0 : i64, scratch_operands = 0 : i64, tpu.core_type = #tpu.core_type<tc>, window_params = [{pipeline_mode = #tpu.pipeline_mode<synchronous>, transform_indices = @transform_0, window_bounds = array<i64: 8, 256>}, {pipeline_mode = #tpu.pipeline_mode<synchronous>, transform_indices = @transform_1, window_bounds = array<i64: 16, 256>}, {pipeline_mode = #tpu.pipeline_mode<synchronous>, transform_indices = @transform_2, window_bounds = array<i64: 16, 1>}, {pipeline_mode = #tpu.pipeline_mode<synchronous>, transform_indices = @transform_3, window_bounds = array<i64: 1, 4>}, {pipeline_mode = #tpu.pipeline_mode<synchronous>, transform_indices = @transform_4, window_bounds = array<i64: 256, 16>}, {pipeline_mode = #tpu.pipeline_mode<synchronous>, transform_indices = @transform_5, window_bounds = array<i64: 16, 256>}, {pipeline_mode = #tpu.pipeline_mode<synchronous>, transform_indices = @transform_6, window_bounds = array<i64: 1, 256>}, {pipeline_mode = #tpu.pipeline_mode<synchronous>, transform_indices = @transform_7, window_bounds = array<i64: 2, 4>}, {pipeline_mode = #tpu.pipeline_mode<synchronous>, transform_indices = @transform_8, window_bounds = array<i64: 2, 256>}]} {
    %c0 = arith.constant 0 : index
    %c0_0 = arith.constant 0 : index
    %0 = vector.load %arg1[%c0, %c0_0] : memref<8x256xf32, #tpu.memory_space<vmem>>, vector<8x256xf32>
    %c0_1 = arith.constant 0 : index
    %c0_2 = arith.constant 0 : index
    %1 = vector.load %arg2[%c0_1, %c0_2] : memref<16x256xf32, #tpu.memory_space<vmem>>, vector<16x256xf32>
    %cst = arith.constant dense<0.000000e+00> : vector<16x8xf32>
    %2 = tpu.matmul %1, %0, %cst {dimension_numbers = #tpu.dot_dimension_numbers<[1], [1], [0], [0], [0, 0, 1, 0], [], []>} : vector<16x256xf32>, vector<8x256xf32>, vector<16x8xf32> -> vector<16x8xf32>
    %cst_3 = arith.constant 0.000000e+00 : f32
    %3 = vector.broadcast %cst_3 : f32 to vector<16x8xf32>
    %4 = arith.maximumf %2, %3 : vector<16x8xf32>
    %c0_4 = arith.constant 0 : index
    %c0_5 = arith.constant 0 : index
    %5 = vector.load %arg3[%c0_4, %c0_5] : memref<16x1xf32, #tpu.memory_space<vmem>>, vector<16x1xf32>
    %6 = vector.broadcast %5 : vector<16x1xf32> to vector<16x8xf32>
    %7 = arith.mulf %4, %6 : vector<16x8xf32>
    %cst_6 = arith.constant dense<0.000000e+00> : vector<8xf32>
    %8 = vector.multi_reduction <add>, %7, %cst_6 [0] : vector<16x8xf32> to vector<8xf32>
    %9 = vector.shape_cast %8 : vector<8xf32> to vector<1x8xf32>
    %10 = vector.extract_strided_slice %9 {offsets = [0, 0], sizes = [1, 4], strides = [1, 1]} : vector<1x8xf32> to vector<1x4xf32>
    %c0_7 = arith.constant 0 : index
    %c0_8 = arith.constant 0 : index
    %11 = vector.load %arg4[%c0_7, %c0_8] : memref<1x4xf32, #tpu.memory_space<vmem>>, vector<1x4xf32>
    %12 = arith.addf %10, %11 : vector<1x4xf32>
    %cst_9 = arith.constant dense<0xFF800000> : vector<1xf32>
    %13 = vector.multi_reduction <maximumf>, %12, %cst_9 [1] : vector<1x4xf32> to vector<1xf32>
    %14 = vector.shape_cast %13 : vector<1xf32> to vector<1x1xf32>
    %15 = vector.broadcast %14 : vector<1x1xf32> to vector<1x4xf32>
    %16 = arith.subf %12, %15 : vector<1x4xf32>
    %17 = math.exp %16 : vector<1x4xf32>
    %cst_10 = arith.constant dense<0.000000e+00> : vector<1xf32>
    %18 = vector.multi_reduction <add>, %17, %cst_10 [1] : vector<1x4xf32> to vector<1xf32>
    %19 = vector.shape_cast %18 : vector<1xf32> to vector<1x1xf32>
    %20 = tpu.reciprocal %19 {approx = true} : vector<1x1xf32> -> vector<1x1xf32>
    %21 = vector.broadcast %20 : vector<1x1xf32> to vector<1x4xf32>
    %22 = arith.mulf %17, %21 : vector<1x4xf32>
    %c0_11 = arith.constant 0 : index
    %c0_12 = arith.constant 0 : index
    %23 = vector.load %arg8[%c0_11, %c0_12] : memref<2x4xf32, #tpu.memory_space<vmem>>, vector<1x4xf32>
    tpu.vector_store %arg8[%c0_11, %c0_12], %22 {strides = array<i32>} : memref<2x4xf32, #tpu.memory_space<vmem>>, vector<1x4xf32>,
    %24 = vector.extract_strided_slice %9 {offsets = [0, 4], sizes = [1, 4], strides = [1, 1]} : vector<1x8xf32> to vector<1x4xf32>
    %c0_13 = arith.constant 0 : index
    %c0_14 = arith.constant 0 : index
    %25 = vector.load %arg4[%c0_13, %c0_14] : memref<1x4xf32, #tpu.memory_space<vmem>>, vector<1x4xf32>
    %26 = arith.addf %24, %25 : vector<1x4xf32>
    %cst_15 = arith.constant dense<0xFF800000> : vector<1xf32>
    %27 = vector.multi_reduction <maximumf>, %26, %cst_15 [1] : vector<1x4xf32> to vector<1xf32>
    %28 = vector.shape_cast %27 : vector<1xf32> to vector<1x1xf32>
    %29 = vector.broadcast %28 : vector<1x1xf32> to vector<1x4xf32>
    %30 = arith.subf %26, %29 : vector<1x4xf32>
    %31 = math.exp %30 : vector<1x4xf32>
    %cst_16 = arith.constant dense<0.000000e+00> : vector<1xf32>
    %32 = vector.multi_reduction <add>, %31, %cst_16 [1] : vector<1x4xf32> to vector<1xf32>
    %33 = vector.shape_cast %32 : vector<1xf32> to vector<1x1xf32>
    %34 = tpu.reciprocal %33 {approx = true} : vector<1x1xf32> -> vector<1x1xf32>
    %35 = vector.broadcast %34 : vector<1x1xf32> to vector<1x4xf32>
    %36 = arith.mulf %31, %35 : vector<1x4xf32>
    %c1 = arith.constant 1 : index
    %c0_17 = arith.constant 0 : index
    %37 = vector.load %arg8[%c1, %c0_17] : memref<2x4xf32, #tpu.memory_space<vmem>>, vector<1x4xf32>
    tpu.vector_store %arg8[%c1, %c0_17], %36 {strides = array<i32>} : memref<2x4xf32, #tpu.memory_space<vmem>>, vector<1x4xf32>,
    %38 = tpu.iota {dimensions = array<i32: 0>} : vector<2x8xi32>
    %39 = tpu.iota {dimensions = array<i32: 1>} : vector<2x8xi32>
    %c4_i32 = arith.constant 4 : i32
    %40 = vector.broadcast %c4_i32 : i32 to vector<2x8xi32>
    %41 = arith.muli %38, %40 : vector<2x8xi32>
    %42 = arith.cmpi sge, %39, %41 : vector<2x8xi32>
    %c4_i32_18 = arith.constant 4 : i32
    %43 = vector.broadcast %c4_i32_18 : i32 to vector<2x8xi32>
    %44 = arith.muli %38, %43 : vector<2x8xi32>
    %c4_i32_19 = arith.constant 4 : i32
    %45 = vector.broadcast %c4_i32_19 : i32 to vector<2x8xi32>
    %46 = arith.addi %44, %45 : vector<2x8xi32>
    %47 = arith.cmpi slt, %39, %46 : vector<2x8xi32>
    %48 = arith.andi %42, %47 : vector<2x8xi1>
    %cst_20 = arith.constant 2.500000e-01 : f32
    %cst_21 = arith.constant 0.000000e+00 : f32
    %49 = vector.broadcast %cst_20 : f32 to vector<2x8xf32>
    %50 = vector.broadcast %cst_21 : f32 to vector<2x8xf32>
    %51 = arith.select %48, %49, %50 : vector<2x8xi1>, vector<2x8xf32>
    %cst_22 = arith.constant dense<0.000000e+00> : vector<2x256xf32>
    %52 = tpu.matmul %51, %0, %cst_22 {dimension_numbers = #tpu.dot_dimension_numbers<[1], [0], [0], [1], [0, 0, 1, 1], [], []>} : vector<2x8xf32>, vector<8x256xf32>, vector<2x256xf32> -> vector<2x256xf32>
    %c0_23 = arith.constant 0 : index
    %c0_24 = arith.constant 0 : index
    %53 = vector.load %arg5[%c0_23, %c0_24] : memref<256x16xf32, #tpu.memory_space<vmem>>, vector<256x16xf32>
    %cst_25 = arith.constant dense<0.000000e+00> : vector<2x16xf32>
    %54 = tpu.matmul %52, %53, %cst_25 {dimension_numbers = #tpu.dot_dimension_numbers<[1], [0], [0], [1], [0, 0, 1, 1], [], []>} : vector<2x256xf32>, vector<256x16xf32>, vector<2x16xf32> -> vector<2x16xf32>
    %cst_26 = arith.constant 0.000000e+00 : f32
    %55 = vector.broadcast %cst_26 : f32 to vector<2x16xf32>
    %56 = arith.maximumf %54, %55 : vector<2x16xf32>
    %c0_27 = arith.constant 0 : index
    %c0_28 = arith.constant 0 : index
    %57 = vector.load %arg6[%c0_27, %c0_28] : memref<16x256xf32, #tpu.memory_space<vmem>>, vector<16x256xf32>
    %cst_29 = arith.constant dense<0.000000e+00> : vector<2x256xf32>
    %58 = tpu.matmul %56, %57, %cst_29 {dimension_numbers = #tpu.dot_dimension_numbers<[1], [0], [0], [1], [0, 0, 1, 1], [], []>} : vector<2x16xf32>, vector<16x256xf32>, vector<2x256xf32> -> vector<2x256xf32>
    %c0_30 = arith.constant 0 : index
    %c0_31 = arith.constant 0 : index
    %59 = vector.load %arg7[%c0_30, %c0_31] : memref<1x256xf32, #tpu.memory_space<vmem>>, vector<1x256xf32>
    %60 = vector.broadcast %59 : vector<1x256xf32> to vector<2x256xf32>
    %61 = arith.addf %58, %60 : vector<2x256xf32>
    %cst_32 = arith.constant dense<0xFF800000> : vector<2xf32>
    %62 = vector.multi_reduction <maximumf>, %61, %cst_32 [1] : vector<2x256xf32> to vector<2xf32>
    %63 = vector.shape_cast %62 : vector<2xf32> to vector<2x1xf32>
    %64 = vector.broadcast %63 : vector<2x1xf32> to vector<2x256xf32>
    %65 = arith.subf %61, %64 : vector<2x256xf32>
    %66 = math.exp %65 : vector<2x256xf32>
    %cst_33 = arith.constant dense<0.000000e+00> : vector<2xf32>
    %67 = vector.multi_reduction <add>, %66, %cst_33 [1] : vector<2x256xf32> to vector<2xf32>
    %68 = vector.shape_cast %67 : vector<2xf32> to vector<2x1xf32>
    %69 = tpu.reciprocal %68 {approx = true} : vector<2x1xf32> -> vector<2x1xf32>
    %70 = vector.broadcast %69 : vector<2x1xf32> to vector<2x256xf32>
    %71 = arith.mulf %66, %70 : vector<2x256xf32>
    %c0_34 = arith.constant 0 : index
    %c0_35 = arith.constant 0 : index
    %72 = vector.load %arg9[%c0_34, %c0_35] : memref<2x256xf32, #tpu.memory_space<vmem>>, vector<2x256xf32>
    tpu.vector_store %arg9[%c0_34, %c0_35], %71 {strides = array<i32>} : memref<2x256xf32, #tpu.memory_space<vmem>>, vector<2x256xf32>,
    return
  }
  func.func @transform_0(%arg0: i32) -> (i32, i32) {
    %c0_i32 = arith.constant 0 : i32
    %c0_i32_0 = arith.constant 0 : i32
    %c0_i32_1 = arith.constant 0 : i32
    return %c0_i32, %c0_i32_0 : i32, i32
  }
  func.func @transform_1(%arg0: i32) -> (i32, i32) {
    %c0_i32 = arith.constant 0 : i32
    %c0_i32_0 = arith.constant 0 : i32
    %c0_i32_1 = arith.constant 0 : i32
    return %c0_i32, %c0_i32_0 : i32, i32
  }
  func.func @transform_2(%arg0: i32) -> (i32, i32) {
    %c0_i32 = arith.constant 0 : i32
    %c0_i32_0 = arith.constant 0 : i32
    %c0_i32_1 = arith.constant 0 : i32
    return %c0_i32, %c0_i32_0 : i32, i32
  }
  func.func @transform_3(%arg0: i32) -> (i32, i32) {
    %c0_i32 = arith.constant 0 : i32
    %c0_i32_0 = arith.constant 0 : i32
    %c0_i32_1 = arith.constant 0 : i32
    return %c0_i32, %c0_i32_0 : i32, i32
  }
  func.func @transform_4(%arg0: i32) -> (i32, i32) {
    %c0_i32 = arith.constant 0 : i32
    %c0_i32_0 = arith.constant 0 : i32
    %c0_i32_1 = arith.constant 0 : i32
    return %c0_i32, %c0_i32_0 : i32, i32
  }
  func.func @transform_5(%arg0: i32) -> (i32, i32) {
    %c0_i32 = arith.constant 0 : i32
    %c0_i32_0 = arith.constant 0 : i32
    %c0_i32_1 = arith.constant 0 : i32
    return %c0_i32, %c0_i32_0 : i32, i32
  }
  func.func @transform_6(%arg0: i32) -> (i32, i32) {
    %c0_i32 = arith.constant 0 : i32
    %c0_i32_0 = arith.constant 0 : i32
    %c0_i32_1 = arith.constant 0 : i32
    return %c0_i32, %c0_i32_0 : i32, i32
  }
  func.func @transform_7(%arg0: i32) -> (i32, i32) {
    %c0_i32 = arith.constant 0 : i32
    %c0_i32_0 = arith.constant 0 : i32
    %c0_i32_1 = arith.constant 0 : i32
    return %c0_i32, %c0_i32_0 : i32, i32
  }
  func.func @transform_8(%arg0: i32) -> (i32, i32) {
    %c0_i32 = arith.constant 0 : i32
    %c0_i32_0 = arith.constant 0 : i32
    %c0_i32_1 = arith.constant 0 : i32
    return %c0_i32, %c0_i32_0 : i32, i32
  }
}

</mosaic_0001>

<llo_original>
// kernel: tpu_custom_call.1
$region0: #{tpu_custom_call.1}
  #allocation0 [shape = 'u32[]', space=smem, size = 0x4, offset = 0x4, fixed_abs, tag = 'smem constant byte address 0x4 - core index']
  #allocation1 [shape = 'u32[72,128]{1,0:T(1,128)}', space=vmem, size = 0x9000, scoped, tag = 'internal scratch']
  %s0 = inlined_call_operand.vmem [shape: f32[8,256], index: 0, kind: input, shape index: {}]
  %s1 = inlined_call_operand.vmem [shape: f32[16,256], index: 1, kind: input, shape index: {}]
  %s2 = inlined_call_operand.vmem [shape: f32[16,1], index: 2, kind: input, shape index: {}]
  %s3 = inlined_call_operand.vmem [shape: f32[1,4], index: 3, kind: input, shape index: {}]
  %s4 = inlined_call_operand.vmem [shape: f32[256,16], index: 4, kind: input, shape index: {}]
  %s5 = inlined_call_operand.vmem [shape: f32[16,256], index: 5, kind: input, shape index: {}]
  %s6 = inlined_call_operand.vmem [shape: f32[1,256], index: 6, kind: input, shape index: {}]
  %s7 = inlined_call_operand.hbm [shape: f32[2,4], index: 7, kind: output, shape index: {0}]
  %s8 = inlined_call_operand.hbm [shape: f32[2,256], index: 8, kind: output, shape index: {1}]
  %9 = xla_tuple %s7, %s8
  %s10 = sld [smem:[#allocation0]]
  $region46: #{tpu_custom_call.1} parent=0
    _
  %s12 = ssub.s32 1, %s10
  %s13 = scalar_select 0, %s12, %s10
  $region1: #{tpu_custom_call.1} parent=0
    #allocation2 [shape = 'u8[1024]{0}', space=vmem, size = 0x400, scoped, tag = 'output window, operand 0, single buffered']
    #allocation3 [shape = 's32[1]{0}', space=sflag, size = 0x4, scoped, tag = 'scoped memory for tpu_custom_call.1']
    #allocation4 [shape = 'u8[2048]{0}', space=vmem, size = 0x800, scoped, tag = 'output window, operand 1, single buffered']
    #allocation5 [shape = 's32[1]{0}', space=sflag, size = 0x4, scoped, tag = 'scoped memory for tpu_custom_call.1']
    %14 = vsyncpa [#allocation3], 0
    %15 = vsyncpa [#allocation5], 0
    // Predicated region
    $region2: #{tpu_custom_call.1} parent=1 // pred_check
      _
    $region3: #{tpu_custom_call.1} parent=1 // pred_check_branch
      %17 = sbr.rel (0) target = $region5
    $region4: #{tpu_custom_call.1} parent=1 // pred_region
      _
    $region5: #{tpu_custom_call.1} parent=1 // pred_fallthru
      _
    // Predicated region
    $region6: #{tpu_custom_call.1} parent=1 // pred_check
      _
    $region7: #{tpu_custom_call.1} parent=1 // pred_check_branch
      %19 = sbr.rel (0) target = $region9
    $region8: #{tpu_custom_call.1} parent=1 // pred_region
      _
    $region9: #{tpu_custom_call.1} parent=1 // pred_fallthru
      _
    // Predicated region
    $region10: #{tpu_custom_call.1} parent=1 // pred_check
      _
    $region11: #{tpu_custom_call.1} parent=1 // pred_check_branch
      %21 = sbr.rel (0) target = $region13
    $region12: #{tpu_custom_call.1} parent=1 // pred_region
      _
    $region13: #{tpu_custom_call.1} parent=1 // pred_fallthru
      _
    // Predicated region
    $region14: #{tpu_custom_call.1} parent=1 // pred_check
      _
    $region15: #{tpu_custom_call.1} parent=1 // pred_check_branch
      %23 = sbr.rel (0) target = $region17
    $region16: #{tpu_custom_call.1} parent=1 // pred_region
      _
    $region17: #{tpu_custom_call.1} parent=1 // pred_fallthru
      _
    // Predicated region
    $region18: #{tpu_custom_call.1} parent=1 // pred_check
      _
    $region19: #{tpu_custom_call.1} parent=1 // pred_check_branch
      %25 = sbr.rel (0) target = $region21
    $region20: #{tpu_custom_call.1} parent=1 // pred_region
      _
    $region21: #{tpu_custom_call.1} parent=1 // pred_fallthru
      _
    // Predicated region
    $region22: #{tpu_custom_call.1} parent=1 // pred_check
      _
    $region23: #{tpu_custom_call.1} parent=1 // pred_check_branch
      %27 = sbr.rel (0) target = $region25
    $region24: #{tpu_custom_call.1} parent=1 // pred_region
      _
    $region25: #{tpu_custom_call.1} parent=1 // pred_fallthru
      _
    // Predicated region
    $region26: #{tpu_custom_call.1} parent=1 // pred_check
      _
    $region27: #{tpu_custom_call.1} parent=1 // pred_check_branch
      %29 = sbr.rel (0) target = $region29
    $region28: #{tpu_custom_call.1} parent=1 // pred_region
      _
    $region29: #{tpu_custom_call.1} parent=1 // pred_fallthru
      _
    %v30 = vld [vmem:[%s0] sm:$0xff]
    %v31 = vld [vmem:[%s0 + $0x8] sm:$0xff]
    %v32 = vld [vmem:[%s1] sm:$0xff]
    %v33 = vld [vmem:[%s1 + $0x8] sm:$0xff]
    %v34 = vld [vmem:[%s1 + $0x10] sm:$0xff]
    %v35 = vld [vmem:[%s1 + $0x18] sm:$0xff]
    %36 = vmatpush.xpose.msra.mxu0 0.0
    %37 = vmatpush.xpose.msra.mxu0 0.0
    %38 = vmatpush.xpose.msra.mxu0 0.0
    %39 = vmatpush.xpose.msra.mxu0 0.0
    %40 = vmatpush.xpose.msra.mxu0 0.0
    %41 = vmatpush.xpose.msra.mxu0 0.0
    %42 = vmatpush.xpose.msra.mxu0 0.0
    %43 = vmatpush.xpose.msra.mxu0 0.0
    %44 = vmatpush.xpose.msra.mxu0 0.0
    %45 = vmatpush.xpose.msra.mxu0 0.0
    %46 = vmatpush.xpose.msra.mxu0 0.0
    %47 = vmatpush.xpose.msra.mxu0 0.0
    %48 = vmatpush.xpose.msra.mxu0 0.0
    %49 = vmatpush.xpose.msra.mxu0 0.0
    %50 = vmatpush.xpose.msra.mxu0 0.0
    %51 = vmatpush.xpose.msra.mxu0 %v30
    %52 = vmatmul.f32.gmra.mxu0 %v32
    %v53 = vpop.f32.mrf.mxu0
    %v54 = vadd.f32 0.0, %v53
    %55 = vmatmul.f32.gmra.mxu0 %v34
    %v56 = vpop.f32.mrf.mxu0
    %v57 = vadd.f32 0.0, %v56
    %58 = vdwg.mxu0
    %59 = vmatpush.xpose.msra.mxu0 0.0
    %60 = vmatpush.xpose.msra.mxu0 0.0
    %61 = vmatpush.xpose.msra.mxu0 0.0
    %62 = vmatpush.xpose.msra.mxu0 0.0
    %63 = vmatpush.xpose.msra.mxu0 0.0
    %64 = vmatpush.xpose.msra.mxu0 0.0
    %65 = vmatpush.xpose.msra.mxu0 0.0
    %66 = vmatpush.xpose.msra.mxu0 0.0
    %67 = vmatpush.xpose.msra.mxu0 0.0
    %68 = vmatpush.xpose.msra.mxu0 0.0
    %69 = vmatpush.xpose.msra.mxu0 0.0
    %70 = vmatpush.xpose.msra.mxu0 0.0
    %71 = vmatpush.xpose.msra.mxu0 0.0
    %72 = vmatpush.xpose.msra.mxu0 0.0
    %73 = vmatpush.xpose.msra.mxu0 0.0
    %74 = vmatpush.xpose.msra.mxu0 %v31
    %75 = vmatmul.f32.gmra.mxu0 %v33
    %v76 = vpop.f32.mrf.mxu0
    %v77 = vadd.f32 %v54, %v76
    %78 = vmatmul.f32.gmra.mxu0 %v35
    %v79 = vpop.f32.mrf.mxu0
    %v80 = vadd.f32 %v57, %v79
    %81 = vdwg.mxu0
    %v82 = vmax.f32 %v77, 0.0
    %v83 = vmax.f32 %v80, 0.0
    %v84 = vld [vmem:[%s2] sm:$0xff]
    %v85 = vld [vmem:[%s2 + $0x8] sm:$0xff]
    %87 = vset.pattern.permute.xlu0 0
    %88 = vperm.xlu0 %87, %v84
    %v89 = vpop.permute.xlu0 %88
    %92 = vset.pattern.permute.xlu0 0
    %93 = vperm.xlu0 %92, %v85
    %v94 = vpop.permute.xlu0 %93
    %v96 = vmul.f32 %v82, %v89
    %v97 = vmul.f32 %v83, %v94
    %vm98 = vcmask 64512
    %v99 = vsel %vm98, %v96, 0.0
    %v100 = vsel %vm98, %v97, 0.0
    %v101 = vadd.f32 %v99, %v100
    %v102 = vrot.slane %v101, 4
    %v103 = vadd.f32 %v101, %v102
    %v104 = vrot.slane %v103, 2
    %v105 = vadd.f32 %v103, %v104
    %v106 = vrot.slane %v105, 1
    %v107 = vadd.f32 %v105, %v106
    %v108 = vld [vmem:[%s3] sm:$0x1]
    %v109 = vadd.f32 %v107, %v108
    %vm110 = vcmask 24576
    %v111 = vsel %vm110, %v109, -inf
    %112 = vmax.xlane.f32.xlu0 %v111
    %v113 = vpop.xlane.xlu0 %112
    %v114 = vsub.f32 %v109, %v113
    %v115 = vmul.f32 %v114, 1.442695
    %v116 = vpow.pop %v115
    %v117 = vsel %vm110, %v116, 0.0
    %118 = vadd.xlane.f32.xlu0 %v117
    %v119 = vpop.xlane.xlu0 %118
    %v120 = vrcp.pop %v119
    %v121 = vmul.f32 %v116, %v120
    %122 = vst.msk [vmem:[#allocation2] sm:$0x1] %vm110, %v121
    %v123 = vld [vmem:[%s3] sm:$0x1]
    %v125 = vperm.slane %v123, 0
    %126 = vrot.lane.b32.xlu0 %v125, 4
    %v127 = vpop.permute.xlu0 %126
    %v129 = vadd.f32 %v107, %v127
    %vm130 = vcmask 57376
    %v131 = vsel %vm130, %v129, -inf
    %132 = vmax.xlane.f32.xlu0 %v131
    %v133 = vpop.xlane.xlu0 %132
    %v134 = vsub.f32 %v129, %v133
    %v135 = vmul.f32 %v134, 1.442695
    %v136 = vpow.pop %v135
    %138 = vrot.lane.b32.xlu0 %v136, 124
    %v139 = vpop.permute.xlu0 %138
    %v141 = vsel %vm110, %v139, 0.0
    %142 = vadd.xlane.f32.xlu0 %v141
    %v143 = vpop.xlane.xlu0 %142
    %v144 = vrcp.pop %v143
    %v145 = vmul.f32 %v136, %v144
    %147 = vrot.lane.b32.xlu0 %v145, 124
    %v148 = vpop.permute.xlu0 %147
    %150 = vst.msk [vmem:[#allocation2 + $0x1] sm:$0x1] %vm110, %v148
    %v151 = vlaneseq
    %v152 = vshrl.u32 %v151, 7
    %v153 = vlaneseq
    %v154 = vand.u32 %v153, 127
    %v155 = vmul.u32 %v152, 4
    %vm156 = vcmp.ge.s32.totalorder %v154, %v155
    %v157 = vadd.s32 %v155, 4
    %vm158 = vcmp.lt.s32.totalorder %v154, %v157
    %vm159 = vmand %vm156, %vm158
    %v160 = vsel %vm159, 0.25, 0.0
    %v162 = vsel %vm98, %v160, 0
    %164 = vmatpush.msra.mxu0 0.0
    %165 = vmatpush.msra.mxu0 0.0
    %166 = vmatpush.msra.mxu0 0.0
    %167 = vmatpush.msra.mxu0 0.0
    %168 = vmatpush.msra.mxu0 0.0
    %169 = vmatpush.msra.mxu0 0.0
    %170 = vmatpush.msra.mxu0 0.0
    %171 = vmatpush.msra.mxu0 0.0
    %172 = vmatpush.msra.mxu0 0.0
    %173 = vmatpush.msra.mxu0 0.0
    %174 = vmatpush.msra.mxu0 0.0
    %175 = vmatpush.msra.mxu0 0.0
    %176 = vmatpush.msra.mxu0 0.0
    %177 = vmatpush.msra.mxu0 0.0
    %178 = vmatpush.msra.mxu0 0.0
    %179 = vmatpush.msra.mxu0 %v30
    %180 = vmatmul.f32.gmra.mxu0 %v162
    %v181 = vpop.f32.mrf.mxu0
    %v182 = vadd.f32 0.0, %v181
    %183 = vdwg.mxu0
    %184 = vmatpush.msra.mxu0 0.0
    %185 = vmatpush.msra.mxu0 0.0
    %186 = vmatpush.msra.mxu0 0.0
    %187 = vmatpush.msra.mxu0 0.0
    %188 = vmatpush.msra.mxu0 0.0
    %189 = vmatpush.msra.mxu0 0.0
    %190 = vmatpush.msra.mxu0 0.0
    %191 = vmatpush.msra.mxu0 0.0
    %192 = vmatpush.msra.mxu0 0.0
    %193 = vmatpush.msra.mxu0 0.0
    %194 = vmatpush.msra.mxu0 0.0
    %195 = vmatpush.msra.mxu0 0.0
    %196 = vmatpush.msra.mxu0 0.0
    %197 = vmatpush.msra.mxu0 0.0
    %198 = vmatpush.msra.mxu0 0.0
    %199 = vmatpush.msra.mxu0 %v31
    %200 = vmatmul.f32.gmra.mxu0 %v162
    %v201 = vpop.f32.mrf.mxu0
    %v202 = vadd.f32 0.0, %v201
    %203 = vdwg.mxu0
    %v204 = vld [vmem:[%s4] sm:$0xff]
    %v205 = vld [vmem:[%s4 + $0x8] sm:$0xff]
    %v206 = vld [vmem:[%s4 + $0x10] sm:$0xff]
    %v207 = vld [vmem:[%s4 + $0x18] sm:$0xff]
    %v208 = vld [vmem:[%s4 + $0x20] sm:$0xff]
    %v209 = vld [vmem:[%s4 + $0x28] sm:$0xff]
    %v210 = vld [vmem:[%s4 + $0x30] sm:$0xff]
    %v211 = vld [vmem:[%s4 + $0x38] sm:$0xff]
    %v212 = vld [vmem:[%s4 + $0x40] sm:$0xff]
    %v213 = vld [vmem:[%s4 + $0x48] sm:$0xff]
    %v214 = vld [vmem:[%s4 + $0x50] sm:$0xff]
    %v215 = vld [vmem:[%s4 + $0x58] sm:$0xff]
    %v216 = vld [vmem:[%s4 + $0x60] sm:$0xff]
    %v217 = vld [vmem:[%s4 + $0x68] sm:$0xff]
    %v218 = vld [vmem:[%s4 + $0x70] sm:$0xff]
    %v219 = vld [vmem:[%s4 + $0x78] sm:$0xff]
    %v220 = vld [vmem:[%s4 + $0x80] sm:$0xff]
    %v221 = vld [vmem:[%s4 + $0x88] sm:$0xff]
    %v222 = vld [vmem:[%s4 + $0x90] sm:$0xff]
    %v223 = vld [vmem:[%s4 + $0x98] sm:$0xff]
    %v224 = vld [vmem:[%s4 + $0xa0] sm:$0xff]
    %v225 = vld [vmem:[%s4 + $0xa8] sm:$0xff]
    %v226 = vld [vmem:[%s4 + $0xb0] sm:$0xff]
    %v227 = vld [vmem:[%s4 + $0xb8] sm:$0xff]
    %v228 = vld [vmem:[%s4 + $0xc0] sm:$0xff]
    %v229 = vld [vmem:[%s4 + $0xc8] sm:$0xff]
    %v230 = vld [vmem:[%s4 + $0xd0] sm:$0xff]
    %v231 = vld [vmem:[%s4 + $0xd8] sm:$0xff]
    %v232 = vld [vmem:[%s4 + $0xe0] sm:$0xff]
    %v233 = vld [vmem:[%s4 + $0xe8] sm:$0xff]
    %v234 = vld [vmem:[%s4 + $0xf0] sm:$0xff]
    %v235 = vld [vmem:[%s4 + $0xf8] sm:$0xff]
    %236 = vmatpush.msra.mxu0 %v219
    %237 = vmatpush.msra.mxu0 %v218
    %238 = vmatpush.msra.mxu0 %v217
    %239 = vmatpush.msra.mxu0 %v216
    %240 = vmatpush.msra.mxu0 %v215
    %241 = vmatpush.msra.mxu0 %v214
    %242 = vmatpush.msra.mxu0 %v213
    %243 = vmatpush.msra.mxu0 %v212
    %244 = vmatpush.msra.mxu0 %v211
    %245 = vmatpush.msra.mxu0 %v210
    %246 = vmatpush.msra.mxu0 %v209
    %247 = vmatpush.msra.mxu0 %v208
    %248 = vmatpush.msra.mxu0 %v207
    %249 = vmatpush.msra.mxu0 %v206
    %250 = vmatpush.msra.mxu0 %v205
    %251 = vmatpush.msra.mxu0 %v204
    %252 = vmatmul.f32.gmra.mxu0 %v182
    %v253 = vpop.f32.mrf.mxu0
    %v254 = vadd.f32 0.0, %v253
    %255 = vdwg.mxu0
    %256 = vmatpush.msra.mxu0 %v235
    %257 = vmatpush.msra.mxu0 %v234
    %258 = vmatpush.msra.mxu0 %v233
    %259 = vmatpush.msra.mxu0 %v232
    %260 = vmatpush.msra.mxu0 %v231
    %261 = vmatpush.msra.mxu0 %v230
    %262 = vmatpush.msra.mxu0 %v229
    %263 = vmatpush.msra.mxu0 %v228
    %264 = vmatpush.msra.mxu0 %v227
    %265 = vmatpush.msra.mxu0 %v226
    %266 = vmatpush.msra.mxu0 %v225
    %267 = vmatpush.msra.mxu0 %v224
    %268 = vmatpush.msra.mxu0 %v223
    %269 = vmatpush.msra.mxu0 %v222
    %270 = vmatpush.msra.mxu0 %v221
    %271 = vmatpush.msra.mxu0 %v220
    %272 = vmatmul.f32.gmra.mxu0 %v202
    %v273 = vpop.f32.mrf.mxu0
    %v274 = vadd.f32 %v254, %v273
    %275 = vdwg.mxu0
    %v276 = vmax.f32 %v274, 0.0
    %v277 = vld [vmem:[%s5] sm:$0xff]
    %v278 = vld [vmem:[%s5 + $0x8] sm:$0xff]
    %v279 = vld [vmem:[%s5 + $0x10] sm:$0xff]
    %v280 = vld [vmem:[%s5 + $0x18] sm:$0xff]
    %v281 = vld [vmem:[%s6] sm:$0x3]
    %v283 = vperm.slane %v281, 0
    %v284 = vperm.slane %v281, 1
    %vm287 = vcmask 130048
    %v289 = vsel %vm287, %v276, 0
    %291 = vmatpush.msra.mxu0 0.0
    %292 = vmatpush.msra.mxu0 0.0
    %293 = vmatpush.msra.mxu0 0.0
    %294 = vmatpush.msra.mxu0 0.0
    %295 = vmatpush.msra.mxu0 0.0
    %296 = vmatpush.msra.mxu0 0.0
    %297 = vmatpush.msra.mxu0 0.0
    %298 = vmatpush.msra.mxu0 0.0
    %299 = vmatpush.msra.mxu0 0.0
    %300 = vmatpush.msra.mxu0 0.0
    %301 = vmatpush.msra.mxu0 0.0
    %302 = vmatpush.msra.mxu0 0.0
    %303 = vmatpush.msra.mxu0 0.0
    %304 = vmatpush.msra.mxu0 0.0
    %305 = vmatpush.msra.mxu0 %v279
    %306 = vmatpush.msra.mxu0 %v277
    %307 = vmatmul.f32.gmra.mxu0 %v289
    %v308 = vpop.f32.mrf.mxu0
    %v309 = vadd.f32 %v283, %v308
    %310 = vdwg.mxu0
    %311 = vmatpush.msra.mxu0 0.0
    %312 = vmatpush.msra.mxu0 0.0
    %313 = vmatpush.msra.mxu0 0.0
    %314 = vmatpush.msra.mxu0 0.0
    %315 = vmatpush.msra.mxu0 0.0
    %316 = vmatpush.msra.mxu0 0.0
    %317 = vmatpush.msra.mxu0 0.0
    %318 = vmatpush.msra.mxu0 0.0
    %319 = vmatpush.msra.mxu0 0.0
    %320 = vmatpush.msra.mxu0 0.0
    %321 = vmatpush.msra.mxu0 0.0
    %322 = vmatpush.msra.mxu0 0.0
    %323 = vmatpush.msra.mxu0 0.0
    %324 = vmatpush.msra.mxu0 0.0
    %325 = vmatpush.msra.mxu0 %v280
    %326 = vmatpush.msra.mxu0 %v278
    %327 = vmatmul.f32.gmra.mxu0 %v289
    %v328 = vpop.f32.mrf.mxu0
    %v329 = vadd.f32 %v284, %v328
    %330 = vdwg.mxu0
    %vm331 = vcmask 1041408
    %v332 = vsel %vm331, %v309, -inf
    %v333 = vsel %vm331, %v329, -inf
    %v334 = vmax.f32 %v332, %v333
    %335 = vmax.xlane.f32.xlu0 %v334
    %v336 = vpop.xlane.xlu0 %335
    %v337 = vsub.f32 %v309, %v336
    %v338 = vsub.f32 %v329, %v336
    %v339 = vmul.f32 %v337, 1.442695
    %v340 = vpow.pop %v339
    %v341 = vmul.f32 %v338, 1.442695
    %v342 = vpow.pop %v341
    %v343 = vsel %vm331, %v340, 0.0
    %v344 = vsel %vm331, %v342, 0.0
    %v345 = vadd.f32 %v343, %v344
    %346 = vadd.xlane.f32.xlu0 %v345
    %v347 = vpop.xlane.xlu0 %346
    %v348 = vrcp.pop %v347
    %v349 = vmul.f32 %v340, %v348
    %v350 = vmul.f32 %v342, %v348
    %v353 = vrot.slane %v350, 6
    %v354 = vsel %vm331, %v349, %v353
    %356 = vst [vmem:[#allocation4] sm:$0xf] %v354
    // Predicated region
    $region30: #{tpu_custom_call.1} parent=1 // pred_check
      _
    $region31: #{tpu_custom_call.1} parent=1 // pred_check_branch
      %358 = sbr.rel (0) target = $region33
    $region32: #{tpu_custom_call.1} parent=1 // pred_region
      %360 = vsyncadd [#allocation3], 0
      %s362 = sshll.u32 [#allocation2], 4
      %s363 = int_to_ptr.vmem [resolvable:$true] %s362
      %s364 = sshll.u32 %s7, 4
      %s365 = int_to_ptr.hbm [resolvable:$true] %s364
      %367 = dma.vmem_to_hbm [thread:$0]  %s363, 32, %s365, [#allocation3]
    $region33: #{tpu_custom_call.1} parent=1 // pred_fallthru
      _
    // Predicated region
    $region34: #{tpu_custom_call.1} parent=1 // pred_check
      _
    $region35: #{tpu_custom_call.1} parent=1 // pred_check_branch
      %369 = sbr.rel (0) target = $region37
    $region36: #{tpu_custom_call.1} parent=1 // pred_region
      %371 = vsyncadd [#allocation5], 0
      %s373 = sshll.u32 [#allocation4], 4
      %s374 = int_to_ptr.vmem [resolvable:$true] %s373
      %s375 = sshll.u32 %s8, 4
      %s376 = int_to_ptr.hbm [resolvable:$true] %s375
      %378 = dma.vmem_to_hbm [thread:$0]  %s374, 64, %s376, [#allocation5]
    $region37: #{tpu_custom_call.1} parent=1 // pred_fallthru
      _
    // Predicated region
    $region38: #{tpu_custom_call.1} parent=1 // pred_check
      _
    $region39: #{tpu_custom_call.1} parent=1 // pred_check_branch
      %380 = sbr.rel (0) target = $region41
    $region40: #{tpu_custom_call.1} parent=1 // pred_region
      %382 = dma.done [#allocation3], 32
    $region41: #{tpu_custom_call.1} parent=1 // pred_fallthru
      _
    // Predicated region
    $region42: #{tpu_custom_call.1} parent=1 // pred_check
      _
    $region43: #{tpu_custom_call.1} parent=1 // pred_check_branch
      %384 = sbr.rel (0) target = $region45
    $region44: #{tpu_custom_call.1} parent=1 // pred_region
      %386 = dma.done [#allocation5], 64
    $region45: #{tpu_custom_call.1} parent=1 // pred_fallthru
      _
    %387 = vsyncpa [#allocation3], 1
    %388 = vsyncpa [#allocation5], 1

</llo_original>
